<compile_context>
chip_gen: v7x
topology: tpu7x:2x2x1
jax: 0.10.0
libtpu: 0.0.40
codegen_flags: <defaults>
</compile_context>

<pallas_src>
import functools
import math

import jax
import jax.numpy as jnp
from jax.experimental import pallas as pl
from jax.experimental.pallas import tpu as pltpu


def make_positional_encoding(max_len: int, d_model: int, dtype=jnp.float32):
    """Replicates the PyTorch __init__ buffer `pe` of shape (1, max_len, d_model)."""
    position = jnp.arange(0.0, max_len, dtype=jnp.float32)[:, None]            # (max_len, 1)
    div_term = jnp.exp(
        jnp.arange(0.0, d_model, 2.0, dtype=jnp.float32)
        * -(math.log(10000.0) / d_model)
    )                                                                           # (d_model/2,)
    angles = position * div_term                                                # (max_len, d_model/2)
    pe = jnp.zeros((max_len, d_model), dtype=jnp.float32)
    pe = pe.at[:, 0::2].set(jnp.sin(angles))
    pe = pe.at[:, 1::2].set(jnp.cos(angles))
    return pe[None].astype(dtype)                                               # (1, max_len, d_model)


def _pe_dropout_kernel(seed_ref, x_ref, pe_ref, o_ref, *,
                       thresh, scale, apply_dropout, BB, TS, S, D):
    # x_ref / o_ref: (BB, TS, D) tiles; pe_ref: (TS, D) tile shared across the batch axis.
    y = x_ref[...] + pe_ref[...][None, :, :]            # broadcast add on VPU

    if apply_dropout:
        shape = (BB, TS, D)
        # Stateless counter-based PRNG keyed on (seed, global flat index) -> tiling-invariant.
        lb = jax.lax.broadcasted_iota(jnp.int32, shape, 0)
        ls = jax.lax.broadcasted_iota(jnp.int32, shape, 1)
        ld = jax.lax.broadcasted_iota(jnp.int32, shape, 2)
        # Per-tile offset folded into a single scalar (scalar unit), broadcast once.
        s0 = pl.program_id(0) * TS                       # grid axis 0 = seq tiles (outer)
        b0 = pl.program_id(1) * BB                       # grid axis 1 = batch blocks (inner)
        tile_key = (b0 * S + s0) * D
        elem = lb * (S * D) + ls * D + ld + tile_key     # int32; wraps like uint32

        h = pltpu.bitcast(elem ^ seed_ref[0], jnp.uint32)
        h = h * jnp.uint32(0x9E3779B1)                   # 2-round fmix-style mix
        h = h ^ (h >> 15)
        h = h * jnp.uint32(0x85EBCA6B)
        h = h ^ (h >> 13)

        # Inverted dropout: drop with prob p (h < thresh), scale survivors by 1/(1-p).
        keep = h >= jnp.uint32(thresh)
        y = jnp.where(keep, y * scale, jnp.zeros_like(y))

    o_ref[...] = y.astype(o_ref.dtype)


def _choose_tiles(B, S, D, itemsize, *, target_tile_bytes=1 << 20, min_steps=8):
    """Pick (batch_block BB, seq_tile TS).

    Goals:
      * enough grid steps for double-buffering (>= min_steps when the slab exceeds a few
        MiB, >= 2 otherwise so both of v7x's TensorCores get work),
      * per-buffer tile <= ~target_tile_bytes so DMAs stay large while all six
        double-buffered pipeline buffers + hash temporaries fit comfortably in VMEM,
      * TS a native sublane multiple for the dtype (unmasked, lane-dense stores).
    """
    sublane = 8 * (4 // itemsize)                        # f32: 8, bf16: 16, int8/fp8: 32
    row_bytes = D * itemsize
    max_rows = max(1, target_tile_bytes // row_bytes)    # rows (batch*seq) per tile

    if S <= max_rows:
        TS = S                                           # full sequence extent in one tile
        BB = max(1, min(B, max_rows // max(S, 1)))
    else:
        BB = 1
        TS = min(S, max(sublane, (max_rows // sublane) * sublane))

    def n_steps(bb, ts):
        return ((B + bb - 1) // bb) * ((S + ts - 1) // ts)

    total_bytes = B * S * D * itemsize
    max_splits = B * ((S + sublane - 1) // sublane)
    want = min_steps if total_bytes > (4 << 20) else min(2, max_splits)

    # Shrink BB first (keeps the shared PE tile amortized), then TS, until enough steps.
    while n_steps(BB, TS) < want and BB > 1:
        BB = max(1, BB // 2)
    while n_steps(BB, TS) < want and TS > sublane:
        TS = max(sublane, ((TS // 2) // sublane) * sublane)
    return BB, TS


def _vmem_limit_bytes(step_bytes):
    """Generation-aware scoped-VMEM limit (>= pipeline buffers + headroom, <= 3/4 physical)."""
    try:
        cap = int(pltpu.get_tpu_info().vmem_capacity_bytes)
    except Exception:
        cap = 64 << 20                                   # v7x per-TC physical (most restrictive)
    want = max(32 << 20, 4 * step_bytes)                 # ~2x headroom for hash temporaries
    return min(want, cap * 3 // 4)


def positional_encoding_forward(x, pe, seed: int, *, p: float = 0.2, training: bool = True):
    """x: (B, S, D); pe: (1, max_len, D).  Returns dropout(x + pe[:, :S]) (inverted dropout)."""
    B, S, D = x.shape
    pe_slice = pe[0, :S, :].astype(x.dtype)              # (S, D) — glue slice/cast in plain JAX
    apply_dropout = bool(training) and float(p) > 0.0

    itemsize = jnp.dtype(x.dtype).itemsize
    BB, TS = _choose_tiles(B, S, D, itemsize)
    # Seq axis OUTER, batch axis INNER: the PE block index only changes with the outer
    # axis, so consecutive (batch) steps reuse the resident PE tile without a new DMA.
    grid = (pl.cdiv(S, TS), pl.cdiv(B, BB))

    step_bytes = (4 * BB * TS * D + 2 * TS * D) * itemsize   # double-buffered x/out + pe
    vmem_limit = _vmem_limit_bytes(step_bytes)

    thresh = min(int(round(float(p) * float(1 << 32))), (1 << 32) - 1)
    scale = 1.0 / (1.0 - float(p)) if apply_dropout else 1.0

    kernel = functools.partial(
        _pe_dropout_kernel,
        thresh=thresh, scale=scale, apply_dropout=apply_dropout,
        BB=BB, TS=TS, S=S, D=D,
    )

    cost = pl.CostEstimate(
        flops=3 * B * S * D,                              # add + mask-scale (bandwidth-bound)
        transcendentals=0,
        bytes_accessed=(2 * B * S * D + S * D) * itemsize,
    )

    return pl.pallas_call(
        kernel,
        out_shape=jax.ShapeDtypeStruct((B, S, D), x.dtype),
        grid_spec=pltpu.PrefetchScalarGridSpec(
            num_scalar_prefetch=1,                        # seed lives in SMEM
            grid=grid,
            in_specs=[
                pl.BlockSpec((BB, TS, D), lambda si, bi, sd: (bi, si, 0)),   # x tile
                pl.BlockSpec((TS, D), lambda si, bi, sd: (si, 0)),           # shared PE tile
            ],
            out_specs=pl.BlockSpec((BB, TS, D), lambda si, bi, sd: (bi, si, 0)),
        ),
        compiler_params=pltpu.CompilerParams(
            # Hash PRNG is order-independent and each output block is written exactly once,
            # so both axes can be sharded across v7x's two TensorCores.
            dimension_semantics=("parallel", "parallel"),
            vmem_limit_bytes=vmem_limit,
        ),
        cost_estimate=cost,
    )(jnp.asarray([seed], dtype=jnp.int32), x, pe_slice)


if __name__ == "__main__":
    MAX_LEN, D, P = 30, 128, 0.2
    key = jax.random.PRNGKey(0)
    pe = make_positional_encoding(MAX_LEN, D)             # deterministic "buffer" init

    # ---- Small shape (module defaults): batch=2, seq=8, d_model=128 ----------------------
    B, S = 2, 8
    x = jax.random.normal(key, (B, S, D), dtype=jnp.float32)

    out_train = jax.block_until_ready(
        positional_encoding_forward(x, pe, seed=42, p=P, training=True))
    out_eval = jax.block_until_ready(
        positional_encoding_forward(x, pe, seed=0, p=P, training=False))

    ref_eval = x + pe[:, :S, :]
    assert out_train.shape == (B, S, D) and out_train.dtype == jnp.float32
    assert jnp.allclose(out_eval, ref_eval, atol=1e-6), "eval-mode mismatch vs x + pe"

    # Dropout semantics: outputs are exactly {0, y/(1-p)}.
    scaled_ref = ref_eval / (1.0 - P)
    is_zero = jnp.isclose(out_train, 0.0)
    is_scaled = jnp.isclose(out_train, scaled_ref, atol=1e-5)
    assert bool(jnp.all(is_zero | is_scaled)), "dropout output is not {0, y/(1-p)}"

    # ---- Medium shape: exercises BB>1 tiles, multi-step grid, keep-rate statistics -------
    B2, S2 = 8, 30
    x2 = jax.random.normal(jax.random.PRNGKey(1), (B2, S2, D), dtype=jnp.float32)
    out2_train = jax.block_until_ready(
        positional_encoding_forward(x2, pe, seed=7, p=P, training=True))
    out2_eval = jax.block_until_ready(
        positional_encoding_forward(x2, pe, seed=7, p=P, training=False))
    assert jnp.allclose(out2_eval, x2 + pe[:, :S2, :], atol=1e-6), "medium eval mismatch"

    keep_rate = float(jnp.mean((out2_train != 0.0).astype(jnp.float32)))
    assert abs(keep_rate - (1.0 - P)) < 0.05, f"keep rate {keep_rate:.3f} far from {1.0 - P}"

    print("KERNEL_OK")
</pallas_src>

<mosaic_0001>
module attributes {stable_mosaic.version = 11 : i64} {
  func.func @_pe_dropout_kernel(%arg0: i32, %arg1: i32, %arg2: memref<1xi32, #tpu.memory_space<smem>>, %arg3: memref<1x8x128xf32, #tpu.memory_space<vmem>>, %arg4: memref<8x128xf32, #tpu.memory_space<vmem>>, %arg5: memref<1x8x128xf32, #tpu.memory_space<vmem>>) attributes {dimension_semantics = [#tpu.dimension_semantics<parallel>, #tpu.dimension_semantics<parallel>], iteration_bounds = array<i64: 1, 2>, scalar_prefetch = 1 : i64, scratch_operands = 0 : i64, tpu.core_type = #tpu.core_type<tc>, window_params = [{transform_indices = @transform_0, window_bounds = array<i64: 1, 8, 128>}, {transform_indices = @transform_1, window_bounds = array<i64: 8, 128>}, {transform_indices = @transform_2, window_bounds = array<i64: 1, 8, 128>}]} {
    %c0 = arith.constant 0 : index
    %c0_0 = arith.constant 0 : index
    %c0_1 = arith.constant 0 : index
    %0 = vector.load %arg3[%c0, %c0_0, %c0_1] : memref<1x8x128xf32, #tpu.memory_space<vmem>>, vector<1x8x128xf32>
    %c0_2 = arith.constant 0 : index
    %c0_3 = arith.constant 0 : index
    %1 = vector.load %arg4[%c0_2, %c0_3] : memref<8x128xf32, #tpu.memory_space<vmem>>, vector<8x128xf32>
    %2 = vector.shape_cast %1 : vector<8x128xf32> to vector<1x8x128xf32>
    %3 = arith.addf %0, %2 : vector<1x8x128xf32>
    %4 = tpu.iota {dimensions = array<i32: 0>} : vector<1x8x128xi32>
    %5 = tpu.iota {dimensions = array<i32: 1>} : vector<1x8x128xi32>
    %6 = tpu.iota {dimensions = array<i32: 2>} : vector<1x8x128xi32>
    %c8_i32 = arith.constant 8 : i32
    %7 = arith.muli %arg0, %c8_i32 : i32
    %c1_i32 = arith.constant 1 : i32
    %8 = arith.muli %arg1, %c1_i32 : i32
    %c8_i32_4 = arith.constant 8 : i32
    %9 = arith.muli %8, %c8_i32_4 : i32
    %10 = arith.addi %9, %7 : i32
    %c128_i32 = arith.constant 128 : i32
    %11 = arith.muli %10, %c128_i32 : i32
    %c1024_i32 = arith.constant 1024 : i32
    %12 = vector.broadcast %c1024_i32 : i32 to vector<1x8x128xi32>
    %13 = arith.muli %4, %12 : vector<1x8x128xi32>
    %c128_i32_5 = arith.constant 128 : i32
    %14 = vector.broadcast %c128_i32_5 : i32 to vector<1x8x128xi32>
    %15 = arith.muli %5, %14 : vector<1x8x128xi32>
    %16 = arith.addi %13, %15 : vector<1x8x128xi32>
    %17 = arith.addi %16, %6 : vector<1x8x128xi32>
    %18 = vector.broadcast %11 : i32 to vector<1x8x128xi32>
    %19 = arith.addi %17, %18 : vector<1x8x128xi32>
    %c0_6 = arith.constant 0 : index
    %20 = memref.load %arg2[%c0_6] : memref<1xi32, #tpu.memory_space<smem>>
    %21 = vector.broadcast %20 : i32 to vector<1x8x128xi32>
    %22 = arith.xori %19, %21 : vector<1x8x128xi32>
    %23 = tpu.bitcast %22 : vector<1x8x128xi32> -> vector<1x8x128xi32>
    %c-1640531535_i32 = arith.constant -1640531535 : i32
    %24 = vector.broadcast %c-1640531535_i32 : i32 to vector<1x8x128xi32>
    %25 = arith.muli %23, %24 : vector<1x8x128xi32>
    %c15_i32 = arith.constant 15 : i32
    %26 = vector.broadcast %c15_i32 : i32 to vector<1x8x128xi32>
    %27 = arith.shrui %25, %26 : vector<1x8x128xi32>
    %28 = arith.xori %25, %27 : vector<1x8x128xi32>
    %c-2048144789_i32 = arith.constant -2048144789 : i32
    %29 = vector.broadcast %c-2048144789_i32 : i32 to vector<1x8x128xi32>
    %30 = arith.muli %28, %29 : vector<1x8x128xi32>
    %c13_i32 = arith.constant 13 : i32
    %31 = vector.broadcast %c13_i32 : i32 to vector<1x8x128xi32>
    %32 = arith.shrui %30, %31 : vector<1x8x128xi32>
    %33 = arith.xori %30, %32 : vector<1x8x128xi32>
    %c858993459_i32 = arith.constant 858993459 : i32
    %34 = vector.broadcast %c858993459_i32 : i32 to vector<1x8x128xi32>
    %35 = arith.cmpi uge, %33, %34 : vector<1x8x128xi32>
    %cst = arith.constant 1.250000e+00 : f32
    %36 = vector.broadcast %cst : f32 to vector<1x8x128xf32>
    %37 = arith.mulf %3, %36 : vector<1x8x128xf32>
    %cst_7 = arith.constant 0.000000e+00 : f32
    %38 = vector.broadcast %cst_7 : f32 to vector<1x8x128xf32>
    %39 = arith.select %35, %37, %38 : vector<1x8x128xi1>, vector<1x8x128xf32>
    %c0_8 = arith.constant 0 : index
    %c0_9 = arith.constant 0 : index
    %c0_10 = arith.constant 0 : index
    %40 = vector.load %arg5[%c0_8, %c0_9, %c0_10] : memref<1x8x128xf32, #tpu.memory_space<vmem>>, vector<1x8x128xf32>
    tpu.vector_store %arg5[%c0_8, %c0_9, %c0_10], %39 {strides = array<i32>} : memref<1x8x128xf32, #tpu.memory_space<vmem>>, vector<1x8x128xf32>,
    return
  }
  func.func @transform_0(%arg0: i32, %arg1: i32, %arg2: memref<1xi32, #tpu.memory_space<smem>>) -> (i32, i32, i32) {
    %c0_i32 = arith.constant 0 : i32
    %c0_i32_0 = arith.constant 0 : i32
    return %arg1, %arg0, %c0_i32 : i32, i32, i32
  }
  func.func @transform_1(%arg0: i32, %arg1: i32, %arg2: memref<1xi32, #tpu.memory_space<smem>>) -> (i32, i32) {
    %c0_i32 = arith.constant 0 : i32
    %c0_i32_0 = arith.constant 0 : i32
    return %arg0, %c0_i32 : i32, i32
  }
  func.func @transform_2(%arg0: i32, %arg1: i32, %arg2: memref<1xi32, #tpu.memory_space<smem>>) -> (i32, i32, i32) {
    %c0_i32 = arith.constant 0 : i32
    %c0_i32_0 = arith.constant 0 : i32
    return %arg1, %arg0, %c0_i32 : i32, i32, i32
  }
}

</mosaic_0001>

<llo_original>
// kernel: tpu_custom_call.1
$region0: #{tpu_custom_call.1}
  #allocation0 [shape = 'u32[]', space=smem, size = 0x4, offset = 0x4, fixed_abs, tag = 'smem constant byte address 0x4 - core index']
  #allocation1 [shape = 'u32[144,128]{1,0:T(1,128)}', space=vmem, size = 0x12000, scoped, tag = 'internal scratch']
  #allocation2 [shape = 's32[1]{0}', space=sflag, size = 0x4, scoped, tag = 'scoped memory for tpu_custom_call.1']
  #allocation3 [shape = 's32[1]{0:T(128)S(6)}', space=smem, size = 0x200, scoped, tag = 'prefetched SMEM operand 0']
  %s0 = inlined_call_operand.<no memory space> [shape: s32[1], index: 0, kind: input, shape index: {}]
  %s1 = inlined_call_operand.hbm [shape: f32[2,8,128], index: 1, kind: input, shape index: {}]
  %s2 = inlined_call_operand.hbm [shape: f32[8,128], index: 2, kind: input, shape index: {}]
  %s3 = inlined_call_operand.hbm [shape: f32[2,8,128], index: 3, kind: output, shape index: {}]
  %s4 = sld [smem:[#allocation0]]
  $region49: #{tpu_custom_call.1} parent=0
    _
  %s6 = ssub.s32 1, %s4
  %s7 = scalar_select 0, %s6, %s4
  %8 = sst [smem:[#allocation3]] %s0
  $region1: #{tpu_custom_call.1} parent=0
    #allocation4 [shape = 'u8[8192]{0}', space=vmem, size = 0x2000, scoped, tag = 'input window, operand 1']
    #allocation5 [shape = 's32[2]{0}', space=sflag, size = 0x8, scoped, tag = 'scoped memory for tpu_custom_call.1']
    #allocation6 [shape = 's32[2]{0}', space=sflag, size = 0x8, scoped, tag = 'scoped memory for tpu_custom_call.1']
    #allocation7 [shape = 'u8[4096]{0}', space=vmem, size = 0x1000, scoped, tag = 'input window, operand 2, single buffered']
    #allocation8 [shape = 's32[1]{0}', space=sflag, size = 0x4, scoped, tag = 'scoped memory for tpu_custom_call.1']
    #allocation9 [shape = 'u8[8192]{0}', space=vmem, size = 0x2000, scoped, tag = 'output window, operand 0']
    %9 = vsyncpa [#allocation5], 0
    %s10 = scalar_lea.sflag [#allocation5], 1
    %11 = vsyncpa %s10, 0
    %12 = vsyncpa [#allocation8], 0
    %13 = vsyncpa [#allocation6], 0
    %s14 = scalar_lea.sflag [#allocation6], 1
    %15 = vsyncpa %s14, 0
    loop: start=0, step=1, limit=4
    $region2: #{tpu_custom_call.1} parent=1 // loop_pre_header
      _
    $region3: #{tpu_custom_call.1} parent=1 // loop_header
      %s17 = sphi 0, %s21
      %p18 = scmp.ge.s32.totalorder %s17, 4
      %s24 = sphi 0, %s36
      %s25 = sphi 0, %s32
      %s26 = sphi 0, %s24
      %s27 = sphi 0, %s25
      %s28 = sphi 0, %s26
      %s29 = sphi 0, %s27
      %s41 = sphi 0, %s43
      %s44 = sphi 0, %s41
      %s45 = sphi 0, %s44
      %s61 = sphi 0, %s45
      %s67 = sphi 0, %s69
      %s70 = sphi 0, %s67
      %s71 = sphi 0, %s70
      %s87 = sphi 0, %s71
      %s95 = sphi 0, %s97
      %s98 = sphi 0, %s95
      %s99 = sphi 0, %s98
      %s115 = sphi 0, %s99
    $region4: #{tpu_custom_call.1} parent=1 // loop_header_branch
      %20 = sbr.rel (%p18) target = $region8
    $region5: #{tpu_custom_call.1} parent=1 // loop_body
      %s22 = ssub.s32 %s17, 1
      %s23 = ssub.s32 %s17, 2
      %s30 = sadd.s32 1, %s25
      %p31 = scmp.ge.s32.totalorder %s30, 2
      %s32 = scalar_select %p31, 0, %s30
      %s33 = sadd.s32 1, %s24
      %s34 = scalar_select %p31, %s33, %s24
      %p35 = scmp.ge.s32.totalorder %s34, 1
      %s36 = scalar_select %p35, 0, %s34
      %s37 = ssub.s32 %s25, %s32
      %s38 = ssub.s32 %s24, %s36
      %s39 = sor.u32 %s37, %s38
      %p40 = scmp.eq.s32.totalorder %s39, 0
      %s42 = sadd.s32 %s41, 1
      %s43 = scalar_select %p40, %s41, %s42
      %p46 = pneg %p40
      %p47 = scmp.eq.s32.totalorder %s17, 1
      %p48 = por %p46, %p47
      %p49 = scmp.ne.s32.totalorder %s41, %s44
      %p50 = scmp.eq.s32.totalorder %s17, 0
      %p51 = por %p49, %p50
      %p52 = scmp.ne.s32.totalorder %s41, %s44
      %p53 = scmp.eq.s32.totalorder %s22, 1
      %p54 = por %p52, %p53
      %p55 = scmp.ne.s32.totalorder %s44, %s45
      %p56 = scmp.eq.s32.totalorder %s22, 0
      %p57 = por %p55, %p56
      %p58 = scmp.ne.s32.totalorder %s44, %s45
      %p59 = scmp.eq.s32.totalorder %s23, 1
      %p60 = por %p58, %p59
      %p62 = scmp.ne.s32.totalorder %s45, %s61
      %p63 = scmp.eq.s32.totalorder %s23, 0
      %p64 = por %p62, %p63
      %s65 = ssub.s32 %s24, %s36
      %p66 = scmp.eq.s32.totalorder %s65, 0
      %s68 = sadd.s32 %s67, 1
      %s69 = scalar_select %p66, %s67, %s68
      %p72 = pneg %p66
      %p73 = scmp.eq.s32.totalorder %s17, 1
      %p74 = por %p72, %p73
      %p75 = scmp.ne.s32.totalorder %s67, %s70
      %p76 = scmp.eq.s32.totalorder %s17, 0
      %p77 = por %p75, %p76
      %p78 = scmp.ne.s32.totalorder %s67, %s70
      %p79 = scmp.eq.s32.totalorder %s22, 1
      %p80 = por %p78, %p79
      %p81 = scmp.ne.s32.totalorder %s70, %s71
      %p82 = scmp.eq.s32.totalorder %s22, 0
      %p83 = por %p81, %p82
      %p84 = scmp.ne.s32.totalorder %s70, %s71
      %p85 = scmp.eq.s32.totalorder %s23, 1
      %p86 = por %p84, %p85
      %p88 = scmp.ne.s32.totalorder %s71, %s87
      %p89 = scmp.eq.s32.totalorder %s23, 0
      %p90 = por %p88, %p89
      %s91 = ssub.s32 %s25, %s32
      %s92 = ssub.s32 %s24, %s36
      %s93 = sor.u32 %s91, %s92
      %p94 = scmp.eq.s32.totalorder %s93, 0
      %s96 = sadd.s32 %s95, 1
      %s97 = scalar_select %p94, %s95, %s96
      %p100 = pneg %p94
      %p101 = scmp.eq.s32.totalorder %s17, 1
      %p102 = por %p100, %p101
      %p103 = scmp.ne.s32.totalorder %s95, %s98
      %p104 = scmp.eq.s32.totalorder %s17, 0
      %p105 = por %p103, %p104
      %p106 = scmp.ne.s32.totalorder %s95, %s98
      %p107 = scmp.eq.s32.totalorder %s22, 1
      %p108 = por %p106, %p107
      %p109 = scmp.ne.s32.totalorder %s98, %s99
      %p110 = scmp.eq.s32.totalorder %s22, 0
      %p111 = por %p109, %p110
      %p112 = scmp.ne.s32.totalorder %s98, %s99
      %p113 = scmp.eq.s32.totalorder %s23, 1
      %p114 = por %p112, %p113
      %p116 = scmp.ne.s32.totalorder %s99, %s115
      %p117 = scmp.eq.s32.totalorder %s23, 0
      %p118 = por %p116, %p117
      %p119 = scmp.le.s32.totalorder 1, %s17
      %p120 = scmp.lt.s32.totalorder %s17, 3
      %p121 = pnand %p119, %p120
      %p122 = pneg %p121
      // Predicated region
      $region9: #{tpu_custom_call.1} parent=5 // pred_check
        _
      $region10: #{tpu_custom_call.1} parent=5 // pred_check_branch
        %124 = sbr.rel (%p121) target = $region12
      $region11: #{tpu_custom_call.1} parent=5 // pred_region
        %s125 = ssub.s32 %s17, 1
        // Predicated region
        $region13: #{tpu_custom_call.1} parent=11 // pred_check
          %p126 = pneg %p83
        $region14: #{tpu_custom_call.1} parent=11 // pred_check_branch
          %128 = sbr.rel (%p126) target = $region16
        $region15: #{tpu_custom_call.1} parent=11 // pred_region
          %s130 = ssub.s32 128, 128
          %131 = vsyncadd [#allocation8], %s130
          %s132 = smul.addr %s26, 128
          %s133 = scalar_lea.hbm %s2, %s132
          %s135 = sshll.u32 [#allocation7], 4
          %s136 = int_to_ptr.vmem [resolvable:$true] %s135
          %138 = dma.hbm_to_vmem [thread:$0]  %s133, 128, %s136, [#allocation8]
        $region16: #{tpu_custom_call.1} parent=11 // pred_fallthru
          _
      $region12: #{tpu_custom_call.1} parent=5 // pred_fallthru
        _
      %p139 = scmp.lt.s32.totalorder %s17, 2
      // Predicated region
      $region17: #{tpu_custom_call.1} parent=5 // pred_check
        %p140 = pneg %p139
      $region18: #{tpu_custom_call.1} parent=5 // pred_check_branch
        %142 = sbr.rel (%p140) target = $region20
      $region19: #{tpu_custom_call.1} parent=5 // pred_region
        // Predicated region
        $region21: #{tpu_custom_call.1} parent=19 // pred_check
          %p143 = pneg %p51
        $region22: #{tpu_custom_call.1} parent=19 // pred_check_branch
          %145 = sbr.rel (%p143) target = $region24
        $region23: #{tpu_custom_call.1} parent=19 // pred_region
          %s146 = sand.u32 %s41, 1
          %s147 = scalar_lea.sflag [#allocation5], %s146
          %s148 = sand.u32 %s41, 1
          %s149 = smul.addr %s148, 8
          %s150 = scalar_lea.vmem [#allocation4], %s149
          %s152 = ssub.s32 128, 128
          %153 = vsyncadd %s147, %s152
          %s154 = sadd.s32 %s24, %s25
          %s155 = smul.addr %s154, 128
          %s156 = scalar_lea.hbm %s1, %s155
          %s158 = sshll.u32 %s150, 4
          %s159 = int_to_ptr.vmem [resolvable:$true] %s158
          %161 = dma.hbm_to_vmem [thread:$0]  %s156, 128, %s159, %s147
        $region24: #{tpu_custom_call.1} parent=19 // pred_fallthru
          _
      $region20: #{tpu_custom_call.1} parent=5 // pred_fallthru
        _
      %p162 = scmp.le.s32.totalorder 1, %s17
      %p163 = scmp.lt.s32.totalorder %s17, 3
      %p164 = pnand %p162, %p163
      %p165 = pneg %p164
      // Predicated region
      $region25: #{tpu_custom_call.1} parent=5 // pred_check
        _
      $region26: #{tpu_custom_call.1} parent=5 // pred_check_branch
        %167 = sbr.rel (%p164) target = $region28
      $region27: #{tpu_custom_call.1} parent=5 // pred_region
        %s168 = ssub.s32 %s17, 1
        %s169 = sand.u32 %s44, 1
        %s170 = scalar_lea.sflag [#allocation5], %s169
        %s171 = sand.u32 %s44, 1
        %s172 = smul.addr %s171, 8
        %s173 = scalar_lea.vmem [#allocation4], %s172
        // Predicated region
        $region29: #{tpu_custom_call.1} parent=27 // pred_check
          %p174 = pneg %p57
        $region30: #{tpu_custom_call.1} parent=27 // pred_check_branch
          %176 = sbr.rel (%p174) target = $region32
        $region31: #{tpu_custom_call.1} parent=27 // pred_region
          %177 = dma.done %s170, 128
        $region32: #{tpu_custom_call.1} parent=27 // pred_fallthru
          _
        // Predicated region
        $region33: #{tpu_custom_call.1} parent=27 // pred_check
          %p178 = pneg %p83
        $region34: #{tpu_custom_call.1} parent=27 // pred_check_branch
          %180 = sbr.rel (%p178) target = $region36
        $region35: #{tpu_custom_call.1} parent=27 // pred_region
          %181 = dma.done [#allocation8], 128
        $region36: #{tpu_custom_call.1} parent=27 // pred_fallthru
          _
        %s182 = sand.u32 %s44, 1
        %s183 = scalar_lea.sflag [#allocation5], %s182
        %s184 = sand.u32 %s44, 1
        %s185 = smul.addr %s184, 8
        %s186 = scalar_lea.vmem [#allocation4], %s185
        %p187 = pneg %p57
        %p188 = pneg %p54
        %p189 = pneg %p83
        %p190 = pneg %p80
        %p191 = pneg %p111
        %p192 = pneg %p108
        %s193 = sand.u32 %s98, 1
        %s194 = scalar_lea.sflag [#allocation6], %s193
        %s195 = sand.u32 %s98, 1
        %s196 = smul.addr %s195, 8
        %s197 = scalar_lea.vmem [#allocation9], %s196
        %v198 = vld [vmem:[%s173] sm:$0xff]
        %v199 = vld [vmem:[#allocation7] sm:$0xff]
        %v200 = vadd.f32 %v198, %v199
        %v201 = vlaneseq
        %v202 = vshrl.u32 %v201, 7
        %v203 = vlaneseq
        %v204 = vand.u32 %v203, 127
        %s205 = smul.u32 %s26, 8
        %s206 = smul.u32 %s27, 8
        %s207 = sadd.s32 %s206, %s205
        %s208 = smul.u32 %s207, 128
        %v209 = vmul.u32 %v202, 128
        %v210 = vadd.s32 %v209, %v204
        %v211 = vstv %s208
        %v212 = vadd.s32 %v210, %v211
        %s213 = sld [smem:[#allocation3]]
        %v214 = vstv %s213
        %v215 = vxor.u32 %v212, %v214
        %v216 = vmul.u32 %v215, 2654435761
        %v217 = vshrl.u32 %v216, 15
        %v218 = vxor.u32 %v216, %v217
        %v219 = vmul.u32 %v218, 2246822507
        %v220 = vshrl.u32 %v219, 13
        %v221 = vxor.u32 %v219, %v220
        %vm222 = vcmp.ge.u32.totalorder %v221, 858993459
        %v223 = vmul.f32 %v200, 1.25
        %v224 = vsel %vm222, %v223, 0.0
        %225 = vst [vmem:[%s197] sm:$0xff] %v224
        %s226 = sand.u32 %s98, 1
        %s227 = scalar_lea.sflag [#allocation6], %s226
        %s228 = sand.u32 %s98, 1
        %s229 = smul.addr %s228, 8
        %s230 = scalar_lea.vmem [#allocation9], %s229
        // Predicated region
        $region37: #{tpu_custom_call.1} parent=27 // pred_check
          %p231 = pneg %p108
        $region38: #{tpu_custom_call.1} parent=27 // pred_check_branch
          %233 = sbr.rel (%p231) target = $region40
        $region39: #{tpu_custom_call.1} parent=27 // pred_region
          %s235 = ssub.s32 128, 128
          %236 = vsyncadd %s227, %s235
          %s237 = sadd.s32 %s26, %s27
          %s238 = smul.addr %s237, 128
          %s239 = scalar_lea.hbm %s3, %s238
          %s241 = sshll.u32 %s230, 4
          %s242 = int_to_ptr.vmem [resolvable:$true] %s241
          %244 = dma.vmem_to_hbm [thread:$0]  %s242, 128, %s239, %s227
        $region40: #{tpu_custom_call.1} parent=27 // pred_fallthru
          _
      $region28: #{tpu_custom_call.1} parent=5 // pred_fallthru
        _
      %p245 = scmp.le.s32.totalorder 2, %s17
      // Predicated region
      $region41: #{tpu_custom_call.1} parent=5 // pred_check
        %p246 = pneg %p245
      $region42: #{tpu_custom_call.1} parent=5 // pred_check_branch
        %248 = sbr.rel (%p246) target = $region44
      $region43: #{tpu_custom_call.1} parent=5 // pred_region
        %s249 = ssub.s32 %s17, 2
        // Predicated region
        $region45: #{tpu_custom_call.1} parent=43 // pred_check
          %p250 = pneg %p114
        $region46: #{tpu_custom_call.1} parent=43 // pred_check_branch
          %252 = sbr.rel (%p250) target = $region48
        $region47: #{tpu_custom_call.1} parent=43 // pred_region
          %s253 = sand.u32 %s99, 1
          %s254 = scalar_lea.sflag [#allocation6], %s253
          %s255 = sand.u32 %s99, 1
          %s256 = smul.addr %s255, 8
          %s257 = scalar_lea.vmem [#allocation9], %s256
          %258 = dma.done %s254, 128
        $region48: #{tpu_custom_call.1} parent=43 // pred_fallthru
          _
      $region44: #{tpu_custom_call.1} parent=5 // pred_fallthru
        _
    $region6: #{tpu_custom_call.1} parent=1 // loop_footer
      %s21 = sadd.s32 1, %s17
    $region7: #{tpu_custom_call.1} parent=1 // loop_footer_branch
      %16 = sbr.rel target = $region3
    $region8: #{tpu_custom_call.1} parent=1 // loop_exit
      _
    %259 = vsyncpa [#allocation5], 1
    %s260 = scalar_lea.sflag [#allocation5], 1
    %261 = vsyncpa %s260, 1
    %262 = vsyncpa [#allocation8], 1
    %263 = vsyncpa [#allocation6], 1
    %s264 = scalar_lea.sflag [#allocation6], 1
    %265 = vsyncpa %s264, 1

</llo_original>
